<compile_context>
chip_gen: v5e
topology: v5e:2x2
jax: 0.10.0
libtpu: 0.0.40
codegen_flags: <defaults>
</compile_context>

<pallas_src>
import functools

import jax
import jax.numpy as jnp
from jax.experimental import pallas as pl
from jax.experimental.pallas import tpu as pltpu

_LANE = 128      # vreg lane width
_SUBLANE = 8     # vreg sublane count
_ROW_TILE = 256  # batch tile for the large-batch (gridded) path
_GELU_C = 0.7978845608028654          # sqrt(2/pi)
_GELU_C3 = _GELU_C * 0.044715         # folded constant


def _round_up(n, m):
    return ((n + m - 1) // m) * m


def _fused_mlp_kernel(x_ref, w_ref, b_ref, o_ref, *, residual_flags):
    """Chains all layers fully in VMEM / vregs.

    x_ref: (rows, dmax)        activations (zero-padded lanes)
    w_ref: (L, dmax, dmax)     stacked zero-padded weights
    b_ref: (L, 1, dmax)        stacked zero-padded biases
    o_ref: (rows, dmax)        output
    `residual_flags[i]` is a static Python bool per layer.
    """
    x = x_ref[...].astype(jnp.float32)
    c = jnp.float32(_GELU_C)
    c3 = jnp.float32(_GELU_C3)
    for li, add_res in enumerate(residual_flags):
        w = w_ref[li]                              # (dmax, dmax), static index
        b = b_ref[li].astype(jnp.float32)          # (1, dmax)

        # Linear: y = x @ W + b  (MXU, f32 accumulation)
        y = jnp.dot(x, w, preferred_element_type=jnp.float32) + b

        # GELU (tanh approximation), one VALU mul trimmed:
        #   0.5*y*(1 + tanh(y*(c + c3*y^2)))  ==  0.5*y*(1 + tanh(c*(y+0.044715*y^3)))
        t = y * y
        g = 0.5 * y * (1.0 + jnp.tanh(y * (c + c3 * t)))

        x = g + x if add_res else g

    o_ref[...] = x.astype(o_ref.dtype)


@functools.lru_cache(maxsize=None)
def _build_forward(b_pad, dmax, n_layers, residual_flags, out_dtype_name,
                   param_dtype_name):
    """Build (and cache) the pallas_call for one static configuration."""
    kernel = functools.partial(_fused_mlp_kernel, residual_flags=residual_flags)
    out_dtype = jnp.dtype(out_dtype_name)
    param_itemsize = jnp.dtype(param_dtype_name).itemsize
    out_shape = jax.ShapeDtypeStruct((b_pad, dmax), out_dtype)

    cost = pl.CostEstimate(
        flops=2 * b_pad * n_layers * dmax * dmax,
        transcendentals=b_pad * n_layers * dmax,
        bytes_accessed=int(2 * b_pad * dmax * out_dtype.itemsize
                           + n_layers * (dmax * dmax + dmax) * param_itemsize),
    )

    if b_pad <= _ROW_TILE:
        # Small batch: gridless call, whole-array VMEM operands, no
        # pipelining machinery / double buffering.
        vmem = pltpu.MemorySpace.VMEM
        return pl.pallas_call(
            kernel,
            out_shape=out_shape,
            in_specs=[pl.BlockSpec(memory_space=vmem)] * 3,
            out_specs=pl.BlockSpec(memory_space=vmem),
            cost_estimate=cost,
        )

    # Large batch: tile rows and mark the axis parallel so megacore (v7x)
    # splits it and x/out DMAs overlap compute. Weights/biases stay resident
    # (constant index_map).
    grid = (b_pad // _ROW_TILE,)
    return pl.pallas_call(
        kernel,
        out_shape=out_shape,
        grid=grid,
        in_specs=[
            pl.BlockSpec((_ROW_TILE, dmax), lambda i: (i, 0)),
            pl.BlockSpec((n_layers, dmax, dmax), lambda i: (0, 0, 0)),
            pl.BlockSpec((n_layers, 1, dmax), lambda i: (0, 0, 0)),
        ],
        out_specs=pl.BlockSpec((_ROW_TILE, dmax), lambda i: (i, 0)),
        compiler_params=pltpu.CompilerParams(
            dimension_semantics=("parallel",),
        ),
        cost_estimate=cost,
    )


def prepare_padded_params(params, param_dtype=jnp.float32):
    """Pad + stack parameters ONCE (off the per-call hot path).

    params: list of (W, b), W: (in, out), b: (out,)  [y = x @ W + b]
    Returns (w_stack (L,dmax,dmax), b_stack (L,1,dmax), dims tuple).
    Use param_dtype=jnp.bfloat16 to halve weight DMA (f32 accumulation kept).
    """
    dims = [params[0][0].shape[0]] + [w.shape[1] for (w, _) in params]
    dmax = max(_round_up(d, _LANE) for d in dims)
    n = len(params)
    w_stack = jnp.zeros((n, dmax, dmax), param_dtype)
    b_stack = jnp.zeros((n, 1, dmax), param_dtype)
    for i, (w, b) in enumerate(params):
        w_stack = w_stack.at[i, : w.shape[0], : w.shape[1]].set(
            w.astype(param_dtype))
        b_stack = b_stack.at[i, 0, : b.shape[0]].set(b.astype(param_dtype))
    return w_stack, b_stack, tuple(int(d) for d in dims)


def deep_neural_network(x, w_stack, b_stack, dims, use_shortcut: bool):
    """Forward pass. x: (B, dims[0]) f32; padded params from prepare_padded_params."""
    B, Din = x.shape
    assert Din == dims[0]
    n_layers = int(w_stack.shape[0])
    dmax = int(w_stack.shape[-1])

    # Residual fires when logical input/output widths match (same check as
    # PyTorch's x.shape == layer_output.shape, batch being constant).
    residual_flags = tuple(
        bool(use_shortcut and dims[i] == dims[i + 1]) for i in range(n_layers)
    )

    # Pad batch to sublanes (and to the row tile when batch-tiled) and
    # features to the stacked lane width; skip padding if already aligned.
    b_pad = _round_up(B, _SUBLANE)
    if b_pad > _ROW_TILE:
        b_pad = _round_up(b_pad, _ROW_TILE)
    if (b_pad, dmax) == (B, Din):
        x_p = x
    else:
        x_p = jnp.zeros((b_pad, dmax), x.dtype).at[:B, :Din].set(x)

    call = _build_forward(b_pad, dmax, n_layers, residual_flags,
                          jnp.dtype(x.dtype).name,
                          jnp.dtype(w_stack.dtype).name)
    out_p = call(x_p, w_stack, b_stack)

    if (b_pad, dmax) == (B, dims[-1]):
        return out_p
    return out_p[:B, : dims[-1]]


def init_params(key, layer_sizes):
    """Deterministic parameter init (PyTorch-Linear-like uniform init)."""
    params = []
    for i in range(len(layer_sizes) - 1):
        fan_in, fan_out = layer_sizes[i], layer_sizes[i + 1]
        key, kw, kb = jax.random.split(key, 3)
        bound = 1.0 / jnp.sqrt(fan_in)
        w = jax.random.uniform(kw, (fan_in, fan_out), jnp.float32, -bound, bound)
        b = jax.random.uniform(kb, (fan_out,), jnp.float32, -bound, bound)
        params.append((w, b))
    return params


def _reference(x, params, use_shortcut: bool):
    """Pure-JAX reference (unpadded) for a correctness check."""
    c = _GELU_C
    for w, b in params:
        y = x @ w + b
        g = 0.5 * y * (1.0 + jnp.tanh(c * (y + 0.044715 * y ** 3)))
        x = g + x if (use_shortcut and x.shape == g.shape) else g
    return x


if __name__ == "__main__":
    key = jax.random.PRNGKey(0)

    # 5 layers; first four preserve width (residuals fire), last one shrinks.
    layer_sizes = [32, 32, 32, 32, 32, 16]
    use_shortcut = True
    batch = 8

    key, kx = jax.random.split(key)
    x = jax.random.normal(kx, (batch, layer_sizes[0]), jnp.float32)
    params = init_params(key, layer_sizes)

    # Padding / stacking done ONCE, outside the forward call.
    w_stack, b_stack, dims = prepare_padded_params(params)

    # Small-batch (gridless) path.
    out = deep_neural_network(x, w_stack, b_stack, dims, use_shortcut)
    out = jax.block_until_ready(out)
    ref = _reference(x, params, use_shortcut)
    assert out.shape == (batch, layer_sizes[-1])
    assert jnp.allclose(out, ref, atol=1e-5, rtol=1e-5), "mismatch vs reference"

    # Large-batch (row-tiled, parallel grid) path sanity check.
    key, kx2 = jax.random.split(key)
    x_big = jax.random.normal(kx2, (512, layer_sizes[0]), jnp.float32)
    out_big = jax.block_until_ready(
        deep_neural_network(x_big, w_stack, b_stack, dims, use_shortcut))
    ref_big = _reference(x_big, params, use_shortcut)
    assert out_big.shape == (512, layer_sizes[-1])
    assert jnp.allclose(out_big, ref_big, atol=1e-5, rtol=1e-5), "mismatch (big)"

    print("KERNEL_OK")
</pallas_src>

<mosaic_0001>
module attributes {stable_mosaic.version = 11 : i64} {
  func.func @_fused_mlp_kernel(%arg0: memref<8x128xf32, #tpu.memory_space<vmem>>, %arg1: memref<5x128x128xf32, #tpu.memory_space<vmem>>, %arg2: memref<5x1x128xf32, #tpu.memory_space<vmem>>, %arg3: memref<8x128xf32, #tpu.memory_space<vmem>>) attributes {dimension_semantics = [], scalar_prefetch = 0 : i64, scratch_operands = 0 : i64, tpu.core_type = #tpu.core_type<tc>} {
    %c0 = arith.constant 0 : index
    %c0_0 = arith.constant 0 : index
    %0 = vector.load %arg0[%c0, %c0_0] : memref<8x128xf32, #tpu.memory_space<vmem>>, vector<8x128xf32>
    %c0_1 = arith.constant 0 : index
    %c0_2 = arith.constant 0 : index
    %c0_3 = arith.constant 0 : index
    %1 = vector.load %arg1[%c0_1, %c0_2, %c0_3] : memref<5x128x128xf32, #tpu.memory_space<vmem>>, vector<1x128x128xf32>
    %2 = vector.shape_cast %1 : vector<1x128x128xf32> to vector<128x128xf32>
    %c0_4 = arith.constant 0 : index
    %c0_5 = arith.constant 0 : index
    %c0_6 = arith.constant 0 : index
    %3 = vector.load %arg2[%c0_4, %c0_5, %c0_6] : memref<5x1x128xf32, #tpu.memory_space<vmem>>, vector<1x1x128xf32>
    %4 = vector.shape_cast %3 : vector<1x1x128xf32> to vector<1x128xf32>
    %cst = arith.constant dense<0.000000e+00> : vector<8x128xf32>
    %5 = tpu.matmul %0, %2, %cst {dimension_numbers = #tpu.dot_dimension_numbers<[1], [0], [0], [1], [0, 0, 1, 1], [], []>} : vector<8x128xf32>, vector<128x128xf32>, vector<8x128xf32> -> vector<8x128xf32>
    %6 = vector.broadcast %4 : vector<1x128xf32> to vector<8x128xf32>
    %7 = arith.addf %5, %6 : vector<8x128xf32>
    %8 = arith.mulf %7, %7 : vector<8x128xf32>
    %cst_7 = arith.constant 5.000000e-01 : f32
    %9 = vector.broadcast %cst_7 : f32 to vector<8x128xf32>
    %10 = arith.mulf %9, %7 : vector<8x128xf32>
    %cst_8 = arith.constant 0.0356774069 : f32
    %11 = vector.broadcast %cst_8 : f32 to vector<8x128xf32>
    %12 = arith.mulf %11, %8 : vector<8x128xf32>
    %cst_9 = arith.constant 0.797884583 : f32
    %13 = vector.broadcast %cst_9 : f32 to vector<8x128xf32>
    %14 = arith.addf %13, %12 : vector<8x128xf32>
    %15 = arith.mulf %7, %14 : vector<8x128xf32>
    %16 = math.tanh %15 : vector<8x128xf32>
    %cst_10 = arith.constant 1.000000e+00 : f32
    %17 = vector.broadcast %cst_10 : f32 to vector<8x128xf32>
    %18 = arith.addf %17, %16 : vector<8x128xf32>
    %19 = arith.mulf %10, %18 : vector<8x128xf32>
    %20 = arith.addf %19, %0 : vector<8x128xf32>
    %c1 = arith.constant 1 : index
    %c0_11 = arith.constant 0 : index
    %c0_12 = arith.constant 0 : index
    %21 = vector.load %arg1[%c1, %c0_11, %c0_12] : memref<5x128x128xf32, #tpu.memory_space<vmem>>, vector<1x128x128xf32>
    %22 = vector.shape_cast %21 : vector<1x128x128xf32> to vector<128x128xf32>
    %c1_13 = arith.constant 1 : index
    %c0_14 = arith.constant 0 : index
    %c0_15 = arith.constant 0 : index
    %23 = vector.load %arg2[%c1_13, %c0_14, %c0_15] : memref<5x1x128xf32, #tpu.memory_space<vmem>>, vector<1x1x128xf32>
    %24 = vector.shape_cast %23 : vector<1x1x128xf32> to vector<1x128xf32>
    %cst_16 = arith.constant dense<0.000000e+00> : vector<8x128xf32>
    %25 = tpu.matmul %20, %22, %cst_16 {dimension_numbers = #tpu.dot_dimension_numbers<[1], [0], [0], [1], [0, 0, 1, 1], [], []>} : vector<8x128xf32>, vector<128x128xf32>, vector<8x128xf32> -> vector<8x128xf32>
    %26 = vector.broadcast %24 : vector<1x128xf32> to vector<8x128xf32>
    %27 = arith.addf %25, %26 : vector<8x128xf32>
    %28 = arith.mulf %27, %27 : vector<8x128xf32>
    %cst_17 = arith.constant 5.000000e-01 : f32
    %29 = vector.broadcast %cst_17 : f32 to vector<8x128xf32>
    %30 = arith.mulf %29, %27 : vector<8x128xf32>
    %cst_18 = arith.constant 0.0356774069 : f32
    %31 = vector.broadcast %cst_18 : f32 to vector<8x128xf32>
    %32 = arith.mulf %31, %28 : vector<8x128xf32>
    %cst_19 = arith.constant 0.797884583 : f32
    %33 = vector.broadcast %cst_19 : f32 to vector<8x128xf32>
    %34 = arith.addf %33, %32 : vector<8x128xf32>
    %35 = arith.mulf %27, %34 : vector<8x128xf32>
    %36 = math.tanh %35 : vector<8x128xf32>
    %cst_20 = arith.constant 1.000000e+00 : f32
    %37 = vector.broadcast %cst_20 : f32 to vector<8x128xf32>
    %38 = arith.addf %37, %36 : vector<8x128xf32>
    %39 = arith.mulf %30, %38 : vector<8x128xf32>
    %40 = arith.addf %39, %20 : vector<8x128xf32>
    %c2 = arith.constant 2 : index
    %c0_21 = arith.constant 0 : index
    %c0_22 = arith.constant 0 : index
    %41 = vector.load %arg1[%c2, %c0_21, %c0_22] : memref<5x128x128xf32, #tpu.memory_space<vmem>>, vector<1x128x128xf32>
    %42 = vector.shape_cast %41 : vector<1x128x128xf32> to vector<128x128xf32>
    %c2_23 = arith.constant 2 : index
    %c0_24 = arith.constant 0 : index
    %c0_25 = arith.constant 0 : index
    %43 = vector.load %arg2[%c2_23, %c0_24, %c0_25] : memref<5x1x128xf32, #tpu.memory_space<vmem>>, vector<1x1x128xf32>
    %44 = vector.shape_cast %43 : vector<1x1x128xf32> to vector<1x128xf32>
    %cst_26 = arith.constant dense<0.000000e+00> : vector<8x128xf32>
    %45 = tpu.matmul %40, %42, %cst_26 {dimension_numbers = #tpu.dot_dimension_numbers<[1], [0], [0], [1], [0, 0, 1, 1], [], []>} : vector<8x128xf32>, vector<128x128xf32>, vector<8x128xf32> -> vector<8x128xf32>
    %46 = vector.broadcast %44 : vector<1x128xf32> to vector<8x128xf32>
    %47 = arith.addf %45, %46 : vector<8x128xf32>
    %48 = arith.mulf %47, %47 : vector<8x128xf32>
    %cst_27 = arith.constant 5.000000e-01 : f32
    %49 = vector.broadcast %cst_27 : f32 to vector<8x128xf32>
    %50 = arith.mulf %49, %47 : vector<8x128xf32>
    %cst_28 = arith.constant 0.0356774069 : f32
    %51 = vector.broadcast %cst_28 : f32 to vector<8x128xf32>
    %52 = arith.mulf %51, %48 : vector<8x128xf32>
    %cst_29 = arith.constant 0.797884583 : f32
    %53 = vector.broadcast %cst_29 : f32 to vector<8x128xf32>
    %54 = arith.addf %53, %52 : vector<8x128xf32>
    %55 = arith.mulf %47, %54 : vector<8x128xf32>
    %56 = math.tanh %55 : vector<8x128xf32>
    %cst_30 = arith.constant 1.000000e+00 : f32
    %57 = vector.broadcast %cst_30 : f32 to vector<8x128xf32>
    %58 = arith.addf %57, %56 : vector<8x128xf32>
    %59 = arith.mulf %50, %58 : vector<8x128xf32>
    %60 = arith.addf %59, %40 : vector<8x128xf32>
    %c3 = arith.constant 3 : index
    %c0_31 = arith.constant 0 : index
    %c0_32 = arith.constant 0 : index
    %61 = vector.load %arg1[%c3, %c0_31, %c0_32] : memref<5x128x128xf32, #tpu.memory_space<vmem>>, vector<1x128x128xf32>
    %62 = vector.shape_cast %61 : vector<1x128x128xf32> to vector<128x128xf32>
    %c3_33 = arith.constant 3 : index
    %c0_34 = arith.constant 0 : index
    %c0_35 = arith.constant 0 : index
    %63 = vector.load %arg2[%c3_33, %c0_34, %c0_35] : memref<5x1x128xf32, #tpu.memory_space<vmem>>, vector<1x1x128xf32>
    %64 = vector.shape_cast %63 : vector<1x1x128xf32> to vector<1x128xf32>
    %cst_36 = arith.constant dense<0.000000e+00> : vector<8x128xf32>
    %65 = tpu.matmul %60, %62, %cst_36 {dimension_numbers = #tpu.dot_dimension_numbers<[1], [0], [0], [1], [0, 0, 1, 1], [], []>} : vector<8x128xf32>, vector<128x128xf32>, vector<8x128xf32> -> vector<8x128xf32>
    %66 = vector.broadcast %64 : vector<1x128xf32> to vector<8x128xf32>
    %67 = arith.addf %65, %66 : vector<8x128xf32>
    %68 = arith.mulf %67, %67 : vector<8x128xf32>
    %cst_37 = arith.constant 5.000000e-01 : f32
    %69 = vector.broadcast %cst_37 : f32 to vector<8x128xf32>
    %70 = arith.mulf %69, %67 : vector<8x128xf32>
    %cst_38 = arith.constant 0.0356774069 : f32
    %71 = vector.broadcast %cst_38 : f32 to vector<8x128xf32>
    %72 = arith.mulf %71, %68 : vector<8x128xf32>
    %cst_39 = arith.constant 0.797884583 : f32
    %73 = vector.broadcast %cst_39 : f32 to vector<8x128xf32>
    %74 = arith.addf %73, %72 : vector<8x128xf32>
    %75 = arith.mulf %67, %74 : vector<8x128xf32>
    %76 = math.tanh %75 : vector<8x128xf32>
    %cst_40 = arith.constant 1.000000e+00 : f32
    %77 = vector.broadcast %cst_40 : f32 to vector<8x128xf32>
    %78 = arith.addf %77, %76 : vector<8x128xf32>
    %79 = arith.mulf %70, %78 : vector<8x128xf32>
    %80 = arith.addf %79, %60 : vector<8x128xf32>
    %c4 = arith.constant 4 : index
    %c0_41 = arith.constant 0 : index
    %c0_42 = arith.constant 0 : index
    %81 = vector.load %arg1[%c4, %c0_41, %c0_42] : memref<5x128x128xf32, #tpu.memory_space<vmem>>, vector<1x128x128xf32>
    %82 = vector.shape_cast %81 : vector<1x128x128xf32> to vector<128x128xf32>
    %c4_43 = arith.constant 4 : index
    %c0_44 = arith.constant 0 : index
    %c0_45 = arith.constant 0 : index
    %83 = vector.load %arg2[%c4_43, %c0_44, %c0_45] : memref<5x1x128xf32, #tpu.memory_space<vmem>>, vector<1x1x128xf32>
    %84 = vector.shape_cast %83 : vector<1x1x128xf32> to vector<1x128xf32>
    %cst_46 = arith.constant dense<0.000000e+00> : vector<8x128xf32>
    %85 = tpu.matmul %80, %82, %cst_46 {dimension_numbers = #tpu.dot_dimension_numbers<[1], [0], [0], [1], [0, 0, 1, 1], [], []>} : vector<8x128xf32>, vector<128x128xf32>, vector<8x128xf32> -> vector<8x128xf32>
    %86 = vector.broadcast %84 : vector<1x128xf32> to vector<8x128xf32>
    %87 = arith.addf %85, %86 : vector<8x128xf32>
    %88 = arith.mulf %87, %87 : vector<8x128xf32>
    %cst_47 = arith.constant 5.000000e-01 : f32
    %89 = vector.broadcast %cst_47 : f32 to vector<8x128xf32>
    %90 = arith.mulf %89, %87 : vector<8x128xf32>
    %cst_48 = arith.constant 0.0356774069 : f32
    %91 = vector.broadcast %cst_48 : f32 to vector<8x128xf32>
    %92 = arith.mulf %91, %88 : vector<8x128xf32>
    %cst_49 = arith.constant 0.797884583 : f32
    %93 = vector.broadcast %cst_49 : f32 to vector<8x128xf32>
    %94 = arith.addf %93, %92 : vector<8x128xf32>
    %95 = arith.mulf %87, %94 : vector<8x128xf32>
    %96 = math.tanh %95 : vector<8x128xf32>
    %cst_50 = arith.constant 1.000000e+00 : f32
    %97 = vector.broadcast %cst_50 : f32 to vector<8x128xf32>
    %98 = arith.addf %97, %96 : vector<8x128xf32>
    %99 = arith.mulf %90, %98 : vector<8x128xf32>
    %c0_51 = arith.constant 0 : index
    %c0_52 = arith.constant 0 : index
    %100 = vector.load %arg3[%c0_51, %c0_52] : memref<8x128xf32, #tpu.memory_space<vmem>>, vector<8x128xf32>
    tpu.vector_store %arg3[%c0_51, %c0_52], %99 {strides = array<i32>} : memref<8x128xf32, #tpu.memory_space<vmem>>, vector<8x128xf32>,
    return
  }
}

</mosaic_0001>

<llo_original>
// kernel: tpu_custom_call.1
$region0: #{tpu_custom_call.1}
  #allocation0 [shape = 'u32[]', space=smem, size = 0x4, offset = 0x4, fixed_abs, tag = 'smem constant byte address 0x4 - core index']
  #allocation1 [shape = 'u32[72,128]{1,0:T(1,128)}', space=vmem, size = 0x9000, scoped, tag = 'internal scratch']
  %s0 = inlined_call_operand.hbm [shape: f32[8,128], index: 0, kind: input, shape index: {}]
  %s1 = inlined_call_operand.hbm [shape: f32[5,128,128], index: 1, kind: input, shape index: {}]
  %s2 = inlined_call_operand.hbm [shape: f32[5,1,128], index: 2, kind: input, shape index: {}]
  %s3 = inlined_call_operand.hbm [shape: f32[8,128], index: 3, kind: output, shape index: {}]
  %s4 = sld [smem:[#allocation0]]
  $region34: #{tpu_custom_call.1} parent=0
    _
  %s6 = ssub.s32 1, %s4
  %s7 = scalar_select 0, %s6, %s4
  $region1: #{tpu_custom_call.1} parent=0
    #allocation2 [shape = 'u8[4096]{0}', space=vmem, size = 0x1000, scoped, tag = 'input window, operand 0, single buffered']
    #allocation3 [shape = 's32[1]{0}', space=sflag, size = 0x4, scoped, tag = 'scoped memory for tpu_custom_call.1']
    #allocation4 [shape = 's32[1]{0}', space=sflag, size = 0x4, scoped, tag = 'scoped memory for tpu_custom_call.1']
    #allocation5 [shape = 'u8[327680]{0}', space=vmem, size = 0x50000, scoped, tag = 'input window, operand 1, single buffered']
    #allocation6 [shape = 's32[1]{0}', space=sflag, size = 0x4, scoped, tag = 'scoped memory for tpu_custom_call.1']
    #allocation7 [shape = 'u8[2560]{0}', space=vmem, size = 0xc00, scoped, tag = 'input window, operand 2, single buffered']
    #allocation8 [shape = 'u8[4096]{0}', space=vmem, size = 0x1000, scoped, tag = 'output window, operand 0, single buffered']
    %8 = vsyncpa [#allocation3], 0
    %9 = vsyncpa [#allocation6], 0
    %10 = vsyncpa [#allocation4], 0
    // Predicated region
    $region2: #{tpu_custom_call.1} parent=1 // pred_check
      _
    $region3: #{tpu_custom_call.1} parent=1 // pred_check_branch
      %12 = sbr.rel (0) target = $region5
    $region4: #{tpu_custom_call.1} parent=1 // pred_region
      %14 = vsyncadd [#allocation3], 0
      %s16 = sshll.u32 %s0, 4
      %s17 = int_to_ptr.hbm [resolvable:$true] %s16
      %s18 = sshll.u32 [#allocation2], 4
      %s19 = int_to_ptr.vmem [resolvable:$true] %s18
      %21 = dma.hbm_to_vmem [thread:$0]  %s17, 128, %s19, [#allocation3]
    $region5: #{tpu_custom_call.1} parent=1 // pred_fallthru
      _
    // Predicated region
    $region6: #{tpu_custom_call.1} parent=1 // pred_check
      _
    $region7: #{tpu_custom_call.1} parent=1 // pred_check_branch
      %23 = sbr.rel (0) target = $region9
    $region8: #{tpu_custom_call.1} parent=1 // pred_region
      %25 = vsyncadd [#allocation6], 0
      %s26 = sshll.u32 %s1, 4
      %s27 = int_to_ptr.hbm [resolvable:$true] %s26
      %s28 = sshll.u32 [#allocation5], 4
      %s29 = int_to_ptr.vmem [resolvable:$true] %s28
      %34 = dma.hbm_to_vmem [thread:$0]  %s27, 10240, %s29, [#allocation6], 128, 128, 8
    $region9: #{tpu_custom_call.1} parent=1 // pred_fallthru
      _
    // Predicated region
    $region10: #{tpu_custom_call.1} parent=1 // pred_check
      _
    $region11: #{tpu_custom_call.1} parent=1 // pred_check_branch
      %36 = sbr.rel (0) target = $region13
    $region12: #{tpu_custom_call.1} parent=1 // pred_region
      %38 = vsyncadd [#allocation6], 0
      %s39 = sshll.u32 %s2, 4
      %s40 = int_to_ptr.hbm [resolvable:$true] %s39
      %s41 = sshll.u32 [#allocation7], 4
      %s42 = int_to_ptr.vmem [resolvable:$true] %s41
      %47 = dma.hbm_to_vmem [thread:$0]  %s40, 80, %s42, [#allocation6], 16, 16, 1
    $region13: #{tpu_custom_call.1} parent=1 // pred_fallthru
      _
    // Predicated region
    $region14: #{tpu_custom_call.1} parent=1 // pred_check
      _
    $region15: #{tpu_custom_call.1} parent=1 // pred_check_branch
      %49 = sbr.rel (0) target = $region17
    $region16: #{tpu_custom_call.1} parent=1 // pred_region
      %51 = dma.done [#allocation3], 128
    $region17: #{tpu_custom_call.1} parent=1 // pred_fallthru
      _
    // Predicated region
    $region18: #{tpu_custom_call.1} parent=1 // pred_check
      _
    $region19: #{tpu_custom_call.1} parent=1 // pred_check_branch
      %53 = sbr.rel (0) target = $region21
    $region20: #{tpu_custom_call.1} parent=1 // pred_region
      %55 = dma.done [#allocation6], 10240
    $region21: #{tpu_custom_call.1} parent=1 // pred_fallthru
      _
    // Predicated region
    $region22: #{tpu_custom_call.1} parent=1 // pred_check
      _
    $region23: #{tpu_custom_call.1} parent=1 // pred_check_branch
      %57 = sbr.rel (0) target = $region25
    $region24: #{tpu_custom_call.1} parent=1 // pred_region
      %59 = dma.done [#allocation6], 80
    $region25: #{tpu_custom_call.1} parent=1 // pred_fallthru
      _
    %v60 = vld [vmem:[#allocation2] sm:$0xff]
    %v61 = vld [vmem:[#allocation5] sm:$0xff]
    %v62 = vld [vmem:[#allocation5 + $0x8] sm:$0xff]
    %v63 = vld [vmem:[#allocation5 + $0x10] sm:$0xff]
    %v64 = vld [vmem:[#allocation5 + $0x18] sm:$0xff]
    %v65 = vld [vmem:[#allocation5 + $0x20] sm:$0xff]
    %v66 = vld [vmem:[#allocation5 + $0x28] sm:$0xff]
    %v67 = vld [vmem:[#allocation5 + $0x30] sm:$0xff]
    %v68 = vld [vmem:[#allocation5 + $0x38] sm:$0xff]
    %v69 = vld [vmem:[#allocation5 + $0x40] sm:$0xff]
    %v70 = vld [vmem:[#allocation5 + $0x48] sm:$0xff]
    %v71 = vld [vmem:[#allocation5 + $0x50] sm:$0xff]
    %v72 = vld [vmem:[#allocation5 + $0x58] sm:$0xff]
    %v73 = vld [vmem:[#allocation5 + $0x60] sm:$0xff]
    %v74 = vld [vmem:[#allocation5 + $0x68] sm:$0xff]
    %v75 = vld [vmem:[#allocation5 + $0x70] sm:$0xff]
    %v76 = vld [vmem:[#allocation5 + $0x78] sm:$0xff]
    %v77 = vld [vmem:[#allocation7] sm:$0x1]
    %v79 = vperm.slane %v77, 0
    %81 = vmatpush.msra.mxu0 %v76
    %82 = vmatpush.msra.mxu0 %v75
    %83 = vmatpush.msra.mxu0 %v74
    %84 = vmatpush.msra.mxu0 %v73
    %85 = vmatpush.msra.mxu0 %v72
    %86 = vmatpush.msra.mxu0 %v71
    %87 = vmatpush.msra.mxu0 %v70
    %88 = vmatpush.msra.mxu0 %v69
    %89 = vmatpush.msra.mxu0 %v68
    %90 = vmatpush.msra.mxu0 %v67
    %91 = vmatpush.msra.mxu0 %v66
    %92 = vmatpush.msra.mxu0 %v65
    %93 = vmatpush.msra.mxu0 %v64
    %94 = vmatpush.msra.mxu0 %v63
    %95 = vmatpush.msra.mxu0 %v62
    %96 = vmatpush.msra.mxu0 %v61
    %97 = vmatmul.f32.gmra.mxu0 %v60
    %v98 = vpop.f32.mrf.mxu0
    %v99 = vadd.f32 %v79, %v98
    %100 = vdwg.mxu0
    %v101 = vmul.f32 %v99, %v99
    %v102 = vmul.f32 %v99, 0.5
    %v103 = vmul.f32 %v101, 0.035677407
    %v104 = vadd.f32 %v103, 0.7978846
    %v105 = vmul.f32 %v99, %v104
    %v106 = vtanh.pop %v105
    %v107 = vadd.f32 %v106, 1.0
    %v108 = vmul.f32 %v102, %v107
    %v109 = vadd.f32 %v108, %v60
    %s110 = scalar_lea.vmem [#allocation5], 128
    %v111 = vld [vmem:[%s110] sm:$0xff]
    %v112 = vld [vmem:[%s110 + $0x8] sm:$0xff]
    %v113 = vld [vmem:[%s110 + $0x10] sm:$0xff]
    %v114 = vld [vmem:[%s110 + $0x18] sm:$0xff]
    %v115 = vld [vmem:[%s110 + $0x20] sm:$0xff]
    %v116 = vld [vmem:[%s110 + $0x28] sm:$0xff]
    %v117 = vld [vmem:[%s110 + $0x30] sm:$0xff]
    %v118 = vld [vmem:[%s110 + $0x38] sm:$0xff]
    %v119 = vld [vmem:[%s110 + $0x40] sm:$0xff]
    %v120 = vld [vmem:[%s110 + $0x48] sm:$0xff]
    %v121 = vld [vmem:[%s110 + $0x50] sm:$0xff]
    %v122 = vld [vmem:[%s110 + $0x58] sm:$0xff]
    %v123 = vld [vmem:[%s110 + $0x60] sm:$0xff]
    %v124 = vld [vmem:[%s110 + $0x68] sm:$0xff]
    %v125 = vld [vmem:[%s110 + $0x70] sm:$0xff]
    %v126 = vld [vmem:[%s110 + $0x78] sm:$0xff]
    %s127 = scalar_lea.vmem [#allocation7], 1
    %v128 = vld [vmem:[%s127] sm:$0x1]
    %v130 = vperm.slane %v128, 0
    %132 = vmatpush.msra.mxu0 %v126
    %133 = vmatpush.msra.mxu0 %v125
    %134 = vmatpush.msra.mxu0 %v124
    %135 = vmatpush.msra.mxu0 %v123
    %136 = vmatpush.msra.mxu0 %v122
    %137 = vmatpush.msra.mxu0 %v121
    %138 = vmatpush.msra.mxu0 %v120
    %139 = vmatpush.msra.mxu0 %v119
    %140 = vmatpush.msra.mxu0 %v118
    %141 = vmatpush.msra.mxu0 %v117
    %142 = vmatpush.msra.mxu0 %v116
    %143 = vmatpush.msra.mxu0 %v115
    %144 = vmatpush.msra.mxu0 %v114
    %145 = vmatpush.msra.mxu0 %v113
    %146 = vmatpush.msra.mxu0 %v112
    %147 = vmatpush.msra.mxu0 %v111
    %148 = vmatmul.f32.gmra.mxu0 %v109
    %v149 = vpop.f32.mrf.mxu0
    %v150 = vadd.f32 %v130, %v149
    %151 = vdwg.mxu0
    %v152 = vmul.f32 %v150, %v150
    %v153 = vmul.f32 %v150, 0.5
    %v154 = vmul.f32 %v152, 0.035677407
    %v155 = vadd.f32 %v154, 0.7978846
    %v156 = vmul.f32 %v150, %v155
    %v157 = vtanh.pop %v156
    %v158 = vadd.f32 %v157, 1.0
    %v159 = vmul.f32 %v153, %v158
    %v160 = vadd.f32 %v159, %v109
    %s161 = scalar_lea.vmem [#allocation5], 256
    %v162 = vld [vmem:[%s161] sm:$0xff]
    %v163 = vld [vmem:[%s161 + $0x8] sm:$0xff]
    %v164 = vld [vmem:[%s161 + $0x10] sm:$0xff]
    %v165 = vld [vmem:[%s161 + $0x18] sm:$0xff]
    %v166 = vld [vmem:[%s161 + $0x20] sm:$0xff]
    %v167 = vld [vmem:[%s161 + $0x28] sm:$0xff]
    %v168 = vld [vmem:[%s161 + $0x30] sm:$0xff]
    %v169 = vld [vmem:[%s161 + $0x38] sm:$0xff]
    %v170 = vld [vmem:[%s161 + $0x40] sm:$0xff]
    %v171 = vld [vmem:[%s161 + $0x48] sm:$0xff]
    %v172 = vld [vmem:[%s161 + $0x50] sm:$0xff]
    %v173 = vld [vmem:[%s161 + $0x58] sm:$0xff]
    %v174 = vld [vmem:[%s161 + $0x60] sm:$0xff]
    %v175 = vld [vmem:[%s161 + $0x68] sm:$0xff]
    %v176 = vld [vmem:[%s161 + $0x70] sm:$0xff]
    %v177 = vld [vmem:[%s161 + $0x78] sm:$0xff]
    %s178 = scalar_lea.vmem [#allocation7], 2
    %v179 = vld [vmem:[%s178] sm:$0x1]
    %v181 = vperm.slane %v179, 0
    %183 = vmatpush.msra.mxu0 %v177
    %184 = vmatpush.msra.mxu0 %v176
    %185 = vmatpush.msra.mxu0 %v175
    %186 = vmatpush.msra.mxu0 %v174
    %187 = vmatpush.msra.mxu0 %v173
    %188 = vmatpush.msra.mxu0 %v172
    %189 = vmatpush.msra.mxu0 %v171
    %190 = vmatpush.msra.mxu0 %v170
    %191 = vmatpush.msra.mxu0 %v169
    %192 = vmatpush.msra.mxu0 %v168
    %193 = vmatpush.msra.mxu0 %v167
    %194 = vmatpush.msra.mxu0 %v166
    %195 = vmatpush.msra.mxu0 %v165
    %196 = vmatpush.msra.mxu0 %v164
    %197 = vmatpush.msra.mxu0 %v163
    %198 = vmatpush.msra.mxu0 %v162
    %199 = vmatmul.f32.gmra.mxu0 %v160
    %v200 = vpop.f32.mrf.mxu0
    %v201 = vadd.f32 %v181, %v200
    %202 = vdwg.mxu0
    %v203 = vmul.f32 %v201, %v201
    %v204 = vmul.f32 %v201, 0.5
    %v205 = vmul.f32 %v203, 0.035677407
    %v206 = vadd.f32 %v205, 0.7978846
    %v207 = vmul.f32 %v201, %v206
    %v208 = vtanh.pop %v207
    %v209 = vadd.f32 %v208, 1.0
    %v210 = vmul.f32 %v204, %v209
    %v211 = vadd.f32 %v210, %v160
    %s212 = scalar_lea.vmem [#allocation5], 384
    %v213 = vld [vmem:[%s212] sm:$0xff]
    %v214 = vld [vmem:[%s212 + $0x8] sm:$0xff]
    %v215 = vld [vmem:[%s212 + $0x10] sm:$0xff]
    %v216 = vld [vmem:[%s212 + $0x18] sm:$0xff]
    %v217 = vld [vmem:[%s212 + $0x20] sm:$0xff]
    %v218 = vld [vmem:[%s212 + $0x28] sm:$0xff]
    %v219 = vld [vmem:[%s212 + $0x30] sm:$0xff]
    %v220 = vld [vmem:[%s212 + $0x38] sm:$0xff]
    %v221 = vld [vmem:[%s212 + $0x40] sm:$0xff]
    %v222 = vld [vmem:[%s212 + $0x48] sm:$0xff]
    %v223 = vld [vmem:[%s212 + $0x50] sm:$0xff]
    %v224 = vld [vmem:[%s212 + $0x58] sm:$0xff]
    %v225 = vld [vmem:[%s212 + $0x60] sm:$0xff]
    %v226 = vld [vmem:[%s212 + $0x68] sm:$0xff]
    %v227 = vld [vmem:[%s212 + $0x70] sm:$0xff]
    %v228 = vld [vmem:[%s212 + $0x78] sm:$0xff]
    %s229 = scalar_lea.vmem [#allocation7], 3
    %v230 = vld [vmem:[%s229] sm:$0x1]
    %v232 = vperm.slane %v230, 0
    %234 = vmatpush.msra.mxu0 %v228
    %235 = vmatpush.msra.mxu0 %v227
    %236 = vmatpush.msra.mxu0 %v226
    %237 = vmatpush.msra.mxu0 %v225
    %238 = vmatpush.msra.mxu0 %v224
    %239 = vmatpush.msra.mxu0 %v223
    %240 = vmatpush.msra.mxu0 %v222
    %241 = vmatpush.msra.mxu0 %v221
    %242 = vmatpush.msra.mxu0 %v220
    %243 = vmatpush.msra.mxu0 %v219
    %244 = vmatpush.msra.mxu0 %v218
    %245 = vmatpush.msra.mxu0 %v217
    %246 = vmatpush.msra.mxu0 %v216
    %247 = vmatpush.msra.mxu0 %v215
    %248 = vmatpush.msra.mxu0 %v214
    %249 = vmatpush.msra.mxu0 %v213
    %250 = vmatmul.f32.gmra.mxu0 %v211
    %v251 = vpop.f32.mrf.mxu0
    %v252 = vadd.f32 %v232, %v251
    %253 = vdwg.mxu0
    %v254 = vmul.f32 %v252, %v252
    %v255 = vmul.f32 %v252, 0.5
    %v256 = vmul.f32 %v254, 0.035677407
    %v257 = vadd.f32 %v256, 0.7978846
    %v258 = vmul.f32 %v252, %v257
    %v259 = vtanh.pop %v258
    %v260 = vadd.f32 %v259, 1.0
    %v261 = vmul.f32 %v255, %v260
    %v262 = vadd.f32 %v261, %v211
    %s263 = scalar_lea.vmem [#allocation5], 512
    %v264 = vld [vmem:[%s263] sm:$0xff]
    %v265 = vld [vmem:[%s263 + $0x8] sm:$0xff]
    %v266 = vld [vmem:[%s263 + $0x10] sm:$0xff]
    %v267 = vld [vmem:[%s263 + $0x18] sm:$0xff]
    %v268 = vld [vmem:[%s263 + $0x20] sm:$0xff]
    %v269 = vld [vmem:[%s263 + $0x28] sm:$0xff]
    %v270 = vld [vmem:[%s263 + $0x30] sm:$0xff]
    %v271 = vld [vmem:[%s263 + $0x38] sm:$0xff]
    %v272 = vld [vmem:[%s263 + $0x40] sm:$0xff]
    %v273 = vld [vmem:[%s263 + $0x48] sm:$0xff]
    %v274 = vld [vmem:[%s263 + $0x50] sm:$0xff]
    %v275 = vld [vmem:[%s263 + $0x58] sm:$0xff]
    %v276 = vld [vmem:[%s263 + $0x60] sm:$0xff]
    %v277 = vld [vmem:[%s263 + $0x68] sm:$0xff]
    %v278 = vld [vmem:[%s263 + $0x70] sm:$0xff]
    %v279 = vld [vmem:[%s263 + $0x78] sm:$0xff]
    %s280 = scalar_lea.vmem [#allocation7], 4
    %v281 = vld [vmem:[%s280] sm:$0x1]
    %v283 = vperm.slane %v281, 0
    %285 = vmatpush.msra.mxu0 %v279
    %286 = vmatpush.msra.mxu0 %v278
    %287 = vmatpush.msra.mxu0 %v277
    %288 = vmatpush.msra.mxu0 %v276
    %289 = vmatpush.msra.mxu0 %v275
    %290 = vmatpush.msra.mxu0 %v274
    %291 = vmatpush.msra.mxu0 %v273
    %292 = vmatpush.msra.mxu0 %v272
    %293 = vmatpush.msra.mxu0 %v271
    %294 = vmatpush.msra.mxu0 %v270
    %295 = vmatpush.msra.mxu0 %v269
    %296 = vmatpush.msra.mxu0 %v268
    %297 = vmatpush.msra.mxu0 %v267
    %298 = vmatpush.msra.mxu0 %v266
    %299 = vmatpush.msra.mxu0 %v265
    %300 = vmatpush.msra.mxu0 %v264
    %301 = vmatmul.f32.gmra.mxu0 %v262
    %v302 = vpop.f32.mrf.mxu0
    %v303 = vadd.f32 %v283, %v302
    %304 = vdwg.mxu0
    %v305 = vmul.f32 %v303, %v303
    %v306 = vmul.f32 %v303, 0.5
    %v307 = vmul.f32 %v305, 0.035677407
    %v308 = vadd.f32 %v307, 0.7978846
    %v309 = vmul.f32 %v303, %v308
    %v310 = vtanh.pop %v309
    %v311 = vadd.f32 %v310, 1.0
    %v312 = vmul.f32 %v306, %v311
    %313 = vst [vmem:[#allocation8] sm:$0xff] %v312
    // Predicated region
    $region26: #{tpu_custom_call.1} parent=1 // pred_check
      _
    $region27: #{tpu_custom_call.1} parent=1 // pred_check_branch
      %315 = sbr.rel (0) target = $region29
    $region28: #{tpu_custom_call.1} parent=1 // pred_region
      %317 = vsyncadd [#allocation4], 0
      %s319 = sshll.u32 [#allocation8], 4
      %s320 = int_to_ptr.vmem [resolvable:$true] %s319
      %s321 = sshll.u32 %s3, 4
      %s322 = int_to_ptr.hbm [resolvable:$true] %s321
      %324 = dma.vmem_to_hbm [thread:$0]  %s320, 128, %s322, [#allocation4]
    $region29: #{tpu_custom_call.1} parent=1 // pred_fallthru
      _
    // Predicated region
    $region30: #{tpu_custom_call.1} parent=1 // pred_check
      _
    $region31: #{tpu_custom_call.1} parent=1 // pred_check_branch
      %326 = sbr.rel (0) target = $region33
    $region32: #{tpu_custom_call.1} parent=1 // pred_region
      %328 = dma.done [#allocation4], 128
    $region33: #{tpu_custom_call.1} parent=1 // pred_fallthru
      _
    %329 = vsyncpa [#allocation3], 1
    %330 = vsyncpa [#allocation6], 1
    %331 = vsyncpa [#allocation4], 1

</llo_original>
